<compile_context>
chip_gen: v5e
topology: v5e:2x2
jax: 0.10.0
libtpu: 0.0.40
codegen_flags: <defaults>
</compile_context>

<pallas_src>
import jax
import jax.numpy as jnp
from jax import lax
from jax.experimental import pallas as pl
from jax.experimental.pallas import tpu as pltpu

EPS = 1e-15


def _log_sigmoid(x):
    # Numerically stable log(sigmoid(x)) = min(x, 0) - log(1 + exp(-|x|)).
    # 1 exp + 1 log per score -> EUP-minimal already.
    return jnp.minimum(x, 0.0) - jnp.log(1.0 + jnp.exp(-jnp.abs(x)))


def _make_kernel(TB, Cp, Cn, N, D):
    """Build the kernel with all sizes static (closed over)."""

    def kernel(tgt_ref, pos_ref, neg_ref,          # per-block int32 index tiles (VMEM)
               th, tr, tt, ch, cr, ct,             # VMEM-resident embedding tables
               out_ref):                           # (1, 1, 128) lane-dense partial loss
        t_tabs = (th, tr, tt)
        c_tabs = (ch, cr, ct)

        iota_n = lax.broadcasted_iota(jnp.int32, (TB, N), 1)

        def one_hot(col_ids):                      # (TB, 1) i32 -> (TB, N) f32
            return jnp.where(col_ids == iota_n, 1.0, 0.0).astype(jnp.float32)

        acc = jnp.float32(0.0)
        # Three components (head / rel / tail); fully unrolled at trace time.
        for c in range(3):
            t_tab = t_tabs[c][...]                 # (N, D) resident table
            c_tab = c_tabs[c][...]                 # (N, D) resident table

            # Target embedding gather: one-hot (TB, N) @ (N, D) on the MXU.
            t_emb = jnp.dot(one_hot(tgt_ref[c]), t_tab,
                            preferred_element_type=jnp.float32)       # (TB, D)

            p_ids = pos_ref[c]                     # (TB, Cp) int32
            n_ids = neg_ref[c]                     # (TB, Cn) int32

            # Count matrices fold the sum over the context axis into the
            # gather matmul (duplicates counted, padding row is all-zero).
            p_cnt = one_hot(p_ids[:, 0:1])
            for j in range(1, Cp):
                p_cnt = p_cnt + one_hot(p_ids[:, j:j + 1])
            n_cnt = one_hot(n_ids[:, 0:1])
            for j in range(1, Cn):
                n_cnt = n_cnt + one_hot(n_ids[:, j:j + 1])

            p_sum = jnp.dot(p_cnt, c_tab, preferred_element_type=jnp.float32)
            n_sum = jnp.dot(n_cnt, c_tab, preferred_element_type=jnp.float32)

            pos_score = t_emb * p_sum + EPS        # (TB, D)
            neg_score = t_emb * n_sum + EPS        # (TB, D)
            acc = acc + jnp.sum(-_log_sigmoid(pos_score)
                                - _log_sigmoid(1.0 - neg_score))

        # Lane-dense unmasked store of the per-step partial sum.
        out_ref[...] = jnp.broadcast_to(acc, (1, 1, 128))

    return kernel


def _pick_block(B):
    if B <= 512:
        return B
    for tb in (512, 256, 128):
        if B % tb == 0:
            return tb
    return B  # single block fallback (no padding logic needed)


def skipgram_triple_loss(target_triples, pos_context, neg_context, params):
    """params: dict with 6 (N, D) float32 tables:
       th, tr, tt (target head/rel/tail), ch, cr, ct (context head/rel/tail)."""
    B = target_triples.shape[0]
    Cp = pos_context.shape[1]
    Cn = neg_context.shape[1]
    N, D = params["th"].shape
    TB = _pick_block(B)
    G = B // TB

    # Residency guard: this fast path keeps all 6 tables in VMEM.
    table_bytes = 6 * N * D * 4
    if table_bytes > (6 << 20):
        # TODO(synk): add a batched DMA-gather fallback for tables too large
        # to be VMEM-resident (and for very large N where the one-hot gather
        # would be wasteful).
        raise NotImplementedError("embedding tables too large for VMEM-resident path")

    # Pre-split the 3-wide index tensors per component in the wrapper.
    #   tgt_idx: (3, B, 1), pos_idx: (3, B, Cp), neg_idx: (3, B, Cn)
    tgt_idx = jnp.transpose(target_triples.astype(jnp.int32), (1, 0))[:, :, None]
    pos_idx = jnp.transpose(pos_context.astype(jnp.int32), (2, 0, 1))
    neg_idx = jnp.transpose(neg_context.astype(jnp.int32), (2, 0, 1))

    kernel = _make_kernel(TB, Cp, Cn, N, D)

    table_spec = pl.BlockSpec((N, D), lambda g: (0, 0))   # constant -> fetched once

    partials = pl.pallas_call(
        kernel,
        out_shape=jax.ShapeDtypeStruct((G, 1, 128), jnp.float32),
        grid=(G,),
        in_specs=[
            pl.BlockSpec((3, TB, 1), lambda g: (0, g, 0)),
            pl.BlockSpec((3, TB, Cp), lambda g: (0, g, 0)),
            pl.BlockSpec((3, TB, Cn), lambda g: (0, g, 0)),
            table_spec, table_spec, table_spec,
            table_spec, table_spec, table_spec,
        ],
        out_specs=pl.BlockSpec((1, 1, 128), lambda g: (g, 0, 0)),
        compiler_params=pltpu.CompilerParams(
            # TODO(synk): use pltpu.CORE_PARALLEL to shard this axis across
            # v7x's two TensorCores once the kernel is compute-bound.
            dimension_semantics=("parallel",),
            vmem_limit_bytes=24 << 20,   # explicit: v5e default is only 16 MiB
        ),
    )(tgt_idx, pos_idx, neg_idx,
      params["th"], params["tr"], params["tt"],
      params["ch"], params["cr"], params["ct"])

    # Each component's torch.mean divides by B*D; the three means are summed.
    return jnp.sum(partials[:, 0, 0]) / jnp.float32(B * D)


def _reference_loss(target_triples, pos_context, neg_context, params):
    """Plain-JAX reference mirroring the PyTorch module (sanity check)."""
    def get_loss(t_idx, p_idx, n_idx, t_tab, c_tab):
        t_emb = t_tab[t_idx][:, None, :]
        p_emb = c_tab[p_idx]
        n_emb = c_tab[n_idx]
        pos_sum = jnp.sum(t_emb * p_emb, axis=1) + EPS
        neg_sum = jnp.sum(t_emb * n_emb, axis=1) + EPS
        pos_score = -jax.nn.log_sigmoid(pos_sum)
        neg_score = -jax.nn.log_sigmoid(1.0 - neg_sum)
        return jnp.mean(pos_score + neg_score)

    lh = get_loss(target_triples[:, 0], pos_context[:, :, 0], neg_context[:, :, 0],
                  params["th"], params["ch"])
    lt = get_loss(target_triples[:, 2], pos_context[:, :, 2], neg_context[:, :, 2],
                  params["tt"], params["ct"])
    lr = get_loss(target_triples[:, 1], pos_context[:, :, 1], neg_context[:, :, 1],
                  params["tr"], params["cr"])
    return lh + lt + lr


def init_params(key, num_nodes, embedding_dim, padding_index):
    n = num_nodes + 1
    keys = jax.random.split(key, 6)
    names = ["th", "tr", "tt", "ch", "cr", "ct"]
    params = {}
    for name, k in zip(names, keys):
        w = jax.random.uniform(k, (n, embedding_dim), jnp.float32,
                               minval=-1.0, maxval=1.0)
        w = w.at[padding_index].set(0.0)
        params[name] = w
    return params


if __name__ == "__main__":
    key = jax.random.PRNGKey(0)

    num_nodes = 63          # -> table rows N = 64
    embedding_dim = 32
    padding_index = 0
    B, Cp, Cn = 8, 4, 4

    k_param, k_t, k_p, k_n = jax.random.split(key, 4)
    params = init_params(k_param, num_nodes, embedding_dim, padding_index)

    target_triples = jax.random.randint(k_t, (B, 3), 0, num_nodes + 1, jnp.int32)
    pos_context = jax.random.randint(k_p, (B, Cp, 3), 0, num_nodes + 1, jnp.int32)
    neg_context = jax.random.randint(k_n, (B, Cn, 3), 0, num_nodes + 1, jnp.int32)

    loss = skipgram_triple_loss(target_triples, pos_context, neg_context, params)
    loss = jax.block_until_ready(loss)

    ref = _reference_loss(target_triples, pos_context, neg_context, params)
    assert jnp.allclose(loss, ref, rtol=1e-5, atol=1e-5), (loss, ref)

    print("KERNEL_OK")
</pallas_src>

<mosaic_0001>
module attributes {stable_mosaic.version = 11 : i64} {
  func.func @kernel(%arg0: i32, %arg1: memref<3x8x1xi32, #tpu.memory_space<vmem>>, %arg2: memref<3x8x4xi32, #tpu.memory_space<vmem>>, %arg3: memref<3x8x4xi32, #tpu.memory_space<vmem>>, %arg4: memref<64x32xf32, #tpu.memory_space<vmem>>, %arg5: memref<64x32xf32, #tpu.memory_space<vmem>>, %arg6: memref<64x32xf32, #tpu.memory_space<vmem>>, %arg7: memref<64x32xf32, #tpu.memory_space<vmem>>, %arg8: memref<64x32xf32, #tpu.memory_space<vmem>>, %arg9: memref<64x32xf32, #tpu.memory_space<vmem>>, %arg10: memref<1x1x128xf32, #tpu.memory_space<vmem>>) attributes {dimension_semantics = [#tpu.dimension_semantics<parallel>], iteration_bounds = array<i64: 1>, scalar_prefetch = 0 : i64, scratch_operands = 0 : i64, tpu.core_type = #tpu.core_type<tc>, window_params = [{transform_indices = @transform_0, window_bounds = array<i64: 3, 8, 1>}, {transform_indices = @transform_1, window_bounds = array<i64: 3, 8, 4>}, {transform_indices = @transform_2, window_bounds = array<i64: 3, 8, 4>}, {pipeline_mode = #tpu.pipeline_mode<synchronous>, transform_indices = @transform_3, window_bounds = array<i64: 64, 32>}, {pipeline_mode = #tpu.pipeline_mode<synchronous>, transform_indices = @transform_4, window_bounds = array<i64: 64, 32>}, {pipeline_mode = #tpu.pipeline_mode<synchronous>, transform_indices = @transform_5, window_bounds = array<i64: 64, 32>}, {pipeline_mode = #tpu.pipeline_mode<synchronous>, transform_indices = @transform_6, window_bounds = array<i64: 64, 32>}, {pipeline_mode = #tpu.pipeline_mode<synchronous>, transform_indices = @transform_7, window_bounds = array<i64: 64, 32>}, {pipeline_mode = #tpu.pipeline_mode<synchronous>, transform_indices = @transform_8, window_bounds = array<i64: 64, 32>}, {transform_indices = @transform_9, window_bounds = array<i64: 1, 1, 128>}]} {
    %0 = tpu.iota {dimensions = array<i32: 1>} : vector<8x64xi32>
    %c0 = arith.constant 0 : index
    %c0_0 = arith.constant 0 : index
    %1 = vector.load %arg4[%c0, %c0_0] : memref<64x32xf32, #tpu.memory_space<vmem>>, vector<64x32xf32>
    %c0_1 = arith.constant 0 : index
    %c0_2 = arith.constant 0 : index
    %2 = vector.load %arg7[%c0_1, %c0_2] : memref<64x32xf32, #tpu.memory_space<vmem>>, vector<64x32xf32>
    %c0_3 = arith.constant 0 : index
    %c0_4 = arith.constant 0 : index
    %c0_5 = arith.constant 0 : index
    %3 = vector.load %arg1[%c0_3, %c0_4, %c0_5] : memref<3x8x1xi32, #tpu.memory_space<vmem>>, vector<1x8x1xi32>
    %4 = vector.shape_cast %3 : vector<1x8x1xi32> to vector<8x1xi32>
    %5 = vector.broadcast %4 : vector<8x1xi32> to vector<8x64xi32>
    %6 = arith.cmpi eq, %5, %0 : vector<8x64xi32>
    %cst = arith.constant 1.000000e+00 : f32
    %cst_6 = arith.constant 0.000000e+00 : f32
    %7 = vector.broadcast %cst : f32 to vector<8x64xf32>
    %8 = vector.broadcast %cst_6 : f32 to vector<8x64xf32>
    %9 = arith.select %6, %7, %8 : vector<8x64xi1>, vector<8x64xf32>
    %cst_7 = arith.constant dense<0.000000e+00> : vector<8x32xf32>
    %10 = tpu.matmul %9, %1, %cst_7 {dimension_numbers = #tpu.dot_dimension_numbers<[1], [0], [0], [1], [0, 0, 1, 1], [], []>} : vector<8x64xf32>, vector<64x32xf32>, vector<8x32xf32> -> vector<8x32xf32>
    %c0_8 = arith.constant 0 : index
    %c0_9 = arith.constant 0 : index
    %c0_10 = arith.constant 0 : index
    %11 = vector.load %arg2[%c0_8, %c0_9, %c0_10] : memref<3x8x4xi32, #tpu.memory_space<vmem>>, vector<1x8x4xi32>
    %12 = vector.shape_cast %11 : vector<1x8x4xi32> to vector<8x4xi32>
    %c0_11 = arith.constant 0 : index
    %c0_12 = arith.constant 0 : index
    %c0_13 = arith.constant 0 : index
    %13 = vector.load %arg3[%c0_11, %c0_12, %c0_13] : memref<3x8x4xi32, #tpu.memory_space<vmem>>, vector<1x8x4xi32>
    %14 = vector.shape_cast %13 : vector<1x8x4xi32> to vector<8x4xi32>
    %15 = vector.extract_strided_slice %12 {offsets = [0, 0], sizes = [8, 1], strides = [1, 1]} : vector<8x4xi32> to vector<8x1xi32>
    %16 = vector.broadcast %15 : vector<8x1xi32> to vector<8x64xi32>
    %17 = arith.cmpi eq, %16, %0 : vector<8x64xi32>
    %cst_14 = arith.constant 1.000000e+00 : f32
    %cst_15 = arith.constant 0.000000e+00 : f32
    %18 = vector.broadcast %cst_14 : f32 to vector<8x64xf32>
    %19 = vector.broadcast %cst_15 : f32 to vector<8x64xf32>
    %20 = arith.select %17, %18, %19 : vector<8x64xi1>, vector<8x64xf32>
    %21 = vector.extract_strided_slice %12 {offsets = [0, 1], sizes = [8, 1], strides = [1, 1]} : vector<8x4xi32> to vector<8x1xi32>
    %22 = vector.broadcast %21 : vector<8x1xi32> to vector<8x64xi32>
    %23 = arith.cmpi eq, %22, %0 : vector<8x64xi32>
    %cst_16 = arith.constant 1.000000e+00 : f32
    %cst_17 = arith.constant 0.000000e+00 : f32
    %24 = vector.broadcast %cst_16 : f32 to vector<8x64xf32>
    %25 = vector.broadcast %cst_17 : f32 to vector<8x64xf32>
    %26 = arith.select %23, %24, %25 : vector<8x64xi1>, vector<8x64xf32>
    %27 = arith.addf %20, %26 : vector<8x64xf32>
    %28 = vector.extract_strided_slice %12 {offsets = [0, 2], sizes = [8, 1], strides = [1, 1]} : vector<8x4xi32> to vector<8x1xi32>
    %29 = vector.broadcast %28 : vector<8x1xi32> to vector<8x64xi32>
    %30 = arith.cmpi eq, %29, %0 : vector<8x64xi32>
    %cst_18 = arith.constant 1.000000e+00 : f32
    %cst_19 = arith.constant 0.000000e+00 : f32
    %31 = vector.broadcast %cst_18 : f32 to vector<8x64xf32>
    %32 = vector.broadcast %cst_19 : f32 to vector<8x64xf32>
    %33 = arith.select %30, %31, %32 : vector<8x64xi1>, vector<8x64xf32>
    %34 = arith.addf %27, %33 : vector<8x64xf32>
    %35 = vector.extract_strided_slice %12 {offsets = [0, 3], sizes = [8, 1], strides = [1, 1]} : vector<8x4xi32> to vector<8x1xi32>
    %36 = vector.broadcast %35 : vector<8x1xi32> to vector<8x64xi32>
    %37 = arith.cmpi eq, %36, %0 : vector<8x64xi32>
    %cst_20 = arith.constant 1.000000e+00 : f32
    %cst_21 = arith.constant 0.000000e+00 : f32
    %38 = vector.broadcast %cst_20 : f32 to vector<8x64xf32>
    %39 = vector.broadcast %cst_21 : f32 to vector<8x64xf32>
    %40 = arith.select %37, %38, %39 : vector<8x64xi1>, vector<8x64xf32>
    %41 = arith.addf %34, %40 : vector<8x64xf32>
    %42 = vector.extract_strided_slice %14 {offsets = [0, 0], sizes = [8, 1], strides = [1, 1]} : vector<8x4xi32> to vector<8x1xi32>
    %43 = vector.broadcast %42 : vector<8x1xi32> to vector<8x64xi32>
    %44 = arith.cmpi eq, %43, %0 : vector<8x64xi32>
    %cst_22 = arith.constant 1.000000e+00 : f32
    %cst_23 = arith.constant 0.000000e+00 : f32
    %45 = vector.broadcast %cst_22 : f32 to vector<8x64xf32>
    %46 = vector.broadcast %cst_23 : f32 to vector<8x64xf32>
    %47 = arith.select %44, %45, %46 : vector<8x64xi1>, vector<8x64xf32>
    %48 = vector.extract_strided_slice %14 {offsets = [0, 1], sizes = [8, 1], strides = [1, 1]} : vector<8x4xi32> to vector<8x1xi32>
    %49 = vector.broadcast %48 : vector<8x1xi32> to vector<8x64xi32>
    %50 = arith.cmpi eq, %49, %0 : vector<8x64xi32>
    %cst_24 = arith.constant 1.000000e+00 : f32
    %cst_25 = arith.constant 0.000000e+00 : f32
    %51 = vector.broadcast %cst_24 : f32 to vector<8x64xf32>
    %52 = vector.broadcast %cst_25 : f32 to vector<8x64xf32>
    %53 = arith.select %50, %51, %52 : vector<8x64xi1>, vector<8x64xf32>
    %54 = arith.addf %47, %53 : vector<8x64xf32>
    %55 = vector.extract_strided_slice %14 {offsets = [0, 2], sizes = [8, 1], strides = [1, 1]} : vector<8x4xi32> to vector<8x1xi32>
    %56 = vector.broadcast %55 : vector<8x1xi32> to vector<8x64xi32>
    %57 = arith.cmpi eq, %56, %0 : vector<8x64xi32>
    %cst_26 = arith.constant 1.000000e+00 : f32
    %cst_27 = arith.constant 0.000000e+00 : f32
    %58 = vector.broadcast %cst_26 : f32 to vector<8x64xf32>
    %59 = vector.broadcast %cst_27 : f32 to vector<8x64xf32>
    %60 = arith.select %57, %58, %59 : vector<8x64xi1>, vector<8x64xf32>
    %61 = arith.addf %54, %60 : vector<8x64xf32>
    %62 = vector.extract_strided_slice %14 {offsets = [0, 3], sizes = [8, 1], strides = [1, 1]} : vector<8x4xi32> to vector<8x1xi32>
    %63 = vector.broadcast %62 : vector<8x1xi32> to vector<8x64xi32>
    %64 = arith.cmpi eq, %63, %0 : vector<8x64xi32>
    %cst_28 = arith.constant 1.000000e+00 : f32
    %cst_29 = arith.constant 0.000000e+00 : f32
    %65 = vector.broadcast %cst_28 : f32 to vector<8x64xf32>
    %66 = vector.broadcast %cst_29 : f32 to vector<8x64xf32>
    %67 = arith.select %64, %65, %66 : vector<8x64xi1>, vector<8x64xf32>
    %68 = arith.addf %61, %67 : vector<8x64xf32>
    %cst_30 = arith.constant dense<0.000000e+00> : vector<8x32xf32>
    %69 = tpu.matmul %41, %2, %cst_30 {dimension_numbers = #tpu.dot_dimension_numbers<[1], [0], [0], [1], [0, 0, 1, 1], [], []>} : vector<8x64xf32>, vector<64x32xf32>, vector<8x32xf32> -> vector<8x32xf32>
    %cst_31 = arith.constant dense<0.000000e+00> : vector<8x32xf32>
    %70 = tpu.matmul %68, %2, %cst_31 {dimension_numbers = #tpu.dot_dimension_numbers<[1], [0], [0], [1], [0, 0, 1, 1], [], []>} : vector<8x64xf32>, vector<64x32xf32>, vector<8x32xf32> -> vector<8x32xf32>
    %71 = arith.mulf %10, %69 : vector<8x32xf32>
    %cst_32 = arith.constant 1.000000e-15 : f32
    %72 = vector.broadcast %cst_32 : f32 to vector<8x32xf32>
    %73 = arith.addf %71, %72 : vector<8x32xf32>
    %74 = arith.mulf %10, %70 : vector<8x32xf32>
    %cst_33 = arith.constant 1.000000e-15 : f32
    %75 = vector.broadcast %cst_33 : f32 to vector<8x32xf32>
    %76 = arith.addf %74, %75 : vector<8x32xf32>
    %cst_34 = arith.constant 0.000000e+00 : f32
    %77 = vector.broadcast %cst_34 : f32 to vector<8x32xf32>
    %78 = arith.minimumf %73, %77 : vector<8x32xf32>
    %79 = math.absf %73 : vector<8x32xf32>
    %cst_35 = arith.constant 0.000000e+00 : f32
    %80 = vector.broadcast %cst_35 : f32 to vector<8x32xf32>
    %81 = arith.subf %80, %79 : vector<8x32xf32>
    %82 = math.exp %81 : vector<8x32xf32>
    %cst_36 = arith.constant 1.000000e+00 : f32
    %83 = vector.broadcast %cst_36 : f32 to vector<8x32xf32>
    %84 = arith.addf %83, %82 : vector<8x32xf32>
    %85 = math.log %84 : vector<8x32xf32>
    %86 = arith.subf %78, %85 : vector<8x32xf32>
    %cst_37 = arith.constant 0.000000e+00 : f32
    %87 = vector.broadcast %cst_37 : f32 to vector<8x32xf32>
    %88 = arith.subf %87, %86 : vector<8x32xf32>
    %cst_38 = arith.constant 1.000000e+00 : f32
    %89 = vector.broadcast %cst_38 : f32 to vector<8x32xf32>
    %90 = arith.subf %89, %76 : vector<8x32xf32>
    %cst_39 = arith.constant 0.000000e+00 : f32
    %91 = vector.broadcast %cst_39 : f32 to vector<8x32xf32>
    %92 = arith.minimumf %90, %91 : vector<8x32xf32>
    %93 = math.absf %90 : vector<8x32xf32>
    %cst_40 = arith.constant 0.000000e+00 : f32
    %94 = vector.broadcast %cst_40 : f32 to vector<8x32xf32>
    %95 = arith.subf %94, %93 : vector<8x32xf32>
    %96 = math.exp %95 : vector<8x32xf32>
    %cst_41 = arith.constant 1.000000e+00 : f32
    %97 = vector.broadcast %cst_41 : f32 to vector<8x32xf32>
    %98 = arith.addf %97, %96 : vector<8x32xf32>
    %99 = math.log %98 : vector<8x32xf32>
    %100 = arith.subf %92, %99 : vector<8x32xf32>
    %101 = arith.subf %88, %100 : vector<8x32xf32>
    %102 = vector.shape_cast %101 : vector<8x32xf32> to vector<1x8x32xf32>
    %cst_42 = arith.constant dense<0.000000e+00> : vector<1xf32>
    %103 = vector.multi_reduction <add>, %102, %cst_42 [1, 2] : vector<1x8x32xf32> to vector<1xf32>
    %104 = vector.shape_cast %103 : vector<1xf32> to vector<1x1x1xf32>
    %105 = vector.extract %104[0, 0, 0] : f32 from vector<1x1x1xf32>
    %cst_43 = arith.constant 0.000000e+00 : f32
    %106 = arith.addf %cst_43, %105 : f32
    %c0_44 = arith.constant 0 : index
    %c0_45 = arith.constant 0 : index
    %107 = vector.load %arg5[%c0_44, %c0_45] : memref<64x32xf32, #tpu.memory_space<vmem>>, vector<64x32xf32>
    %c0_46 = arith.constant 0 : index
    %c0_47 = arith.constant 0 : index
    %108 = vector.load %arg8[%c0_46, %c0_47] : memref<64x32xf32, #tpu.memory_space<vmem>>, vector<64x32xf32>
    %c1 = arith.constant 1 : index
    %c0_48 = arith.constant 0 : index
    %c0_49 = arith.constant 0 : index
    %109 = vector.load %arg1[%c1, %c0_48, %c0_49] : memref<3x8x1xi32, #tpu.memory_space<vmem>>, vector<1x8x1xi32>
    %110 = vector.shape_cast %109 : vector<1x8x1xi32> to vector<8x1xi32>
    %111 = vector.broadcast %110 : vector<8x1xi32> to vector<8x64xi32>
    %112 = arith.cmpi eq, %111, %0 : vector<8x64xi32>
    %cst_50 = arith.constant 1.000000e+00 : f32
    %cst_51 = arith.constant 0.000000e+00 : f32
    %113 = vector.broadcast %cst_50 : f32 to vector<8x64xf32>
    %114 = vector.broadcast %cst_51 : f32 to vector<8x64xf32>
    %115 = arith.select %112, %113, %114 : vector<8x64xi1>, vector<8x64xf32>
    %cst_52 = arith.constant dense<0.000000e+00> : vector<8x32xf32>
    %116 = tpu.matmul %115, %107, %cst_52 {dimension_numbers = #tpu.dot_dimension_numbers<[1], [0], [0], [1], [0, 0, 1, 1], [], []>} : vector<8x64xf32>, vector<64x32xf32>, vector<8x32xf32> -> vector<8x32xf32>
    %c1_53 = arith.constant 1 : index
    %c0_54 = arith.constant 0 : index
    %c0_55 = arith.constant 0 : index
    %117 = vector.load %arg2[%c1_53, %c0_54, %c0_55] : memref<3x8x4xi32, #tpu.memory_space<vmem>>, vector<1x8x4xi32>
    %118 = vector.shape_cast %117 : vector<1x8x4xi32> to vector<8x4xi32>
    %c1_56 = arith.constant 1 : index
    %c0_57 = arith.constant 0 : index
    %c0_58 = arith.constant 0 : index
    %119 = vector.load %arg3[%c1_56, %c0_57, %c0_58] : memref<3x8x4xi32, #tpu.memory_space<vmem>>, vector<1x8x4xi32>
    %120 = vector.shape_cast %119 : vector<1x8x4xi32> to vector<8x4xi32>
    %121 = vector.extract_strided_slice %118 {offsets = [0, 0], sizes = [8, 1], strides = [1, 1]} : vector<8x4xi32> to vector<8x1xi32>
    %122 = vector.broadcast %121 : vector<8x1xi32> to vector<8x64xi32>
    %123 = arith.cmpi eq, %122, %0 : vector<8x64xi32>
    %cst_59 = arith.constant 1.000000e+00 : f32
    %cst_60 = arith.constant 0.000000e+00 : f32
    %124 = vector.broadcast %cst_59 : f32 to vector<8x64xf32>
    %125 = vector.broadcast %cst_60 : f32 to vector<8x64xf32>
    %126 = arith.select %123, %124, %125 : vector<8x64xi1>, vector<8x64xf32>
    %127 = vector.extract_strided_slice %118 {offsets = [0, 1], sizes = [8, 1], strides = [1, 1]} : vector<8x4xi32> to vector<8x1xi32>
    %128 = vector.broadcast %127 : vector<8x1xi32> to vector<8x64xi32>
    %129 = arith.cmpi eq, %128, %0 : vector<8x64xi32>
    %cst_61 = arith.constant 1.000000e+00 : f32
    %cst_62 = arith.constant 0.000000e+00 : f32
    %130 = vector.broadcast %cst_61 : f32 to vector<8x64xf32>
    %131 = vector.broadcast %cst_62 : f32 to vector<8x64xf32>
    %132 = arith.select %129, %130, %131 : vector<8x64xi1>, vector<8x64xf32>
    %133 = arith.addf %126, %132 : vector<8x64xf32>
    %134 = vector.extract_strided_slice %118 {offsets = [0, 2], sizes = [8, 1], strides = [1, 1]} : vector<8x4xi32> to vector<8x1xi32>
    %135 = vector.broadcast %134 : vector<8x1xi32> to vector<8x64xi32>
    %136 = arith.cmpi eq, %135, %0 : vector<8x64xi32>
    %cst_63 = arith.constant 1.000000e+00 : f32
    %cst_64 = arith.constant 0.000000e+00 : f32
    %137 = vector.broadcast %cst_63 : f32 to vector<8x64xf32>
    %138 = vector.broadcast %cst_64 : f32 to vector<8x64xf32>
    %139 = arith.select %136, %137, %138 : vector<8x64xi1>, vector<8x64xf32>
    %140 = arith.addf %133, %139 : vector<8x64xf32>
    %141 = vector.extract_strided_slice %118 {offsets = [0, 3], sizes = [8, 1], strides = [1, 1]} : vector<8x4xi32> to vector<8x1xi32>
    %142 = vector.broadcast %141 : vector<8x1xi32> to vector<8x64xi32>
    %143 = arith.cmpi eq, %142, %0 : vector<8x64xi32>
    %cst_65 = arith.constant 1.000000e+00 : f32
    %cst_66 = arith.constant 0.000000e+00 : f32
    %144 = vector.broadcast %cst_65 : f32 to vector<8x64xf32>
    %145 = vector.broadcast %cst_66 : f32 to vector<8x64xf32>
    %146 = arith.select %143, %144, %145 : vector<8x64xi1>, vector<8x64xf32>
    %147 = arith.addf %140, %146 : vector<8x64xf32>
    %148 = vector.extract_strided_slice %120 {offsets = [0, 0], sizes = [8, 1], strides = [1, 1]} : vector<8x4xi32> to vector<8x1xi32>
    %149 = vector.broadcast %148 : vector<8x1xi32> to vector<8x64xi32>
    %150 = arith.cmpi eq, %149, %0 : vector<8x64xi32>
    %cst_67 = arith.constant 1.000000e+00 : f32
    %cst_68 = arith.constant 0.000000e+00 : f32
    %151 = vector.broadcast %cst_67 : f32 to vector<8x64xf32>
    %152 = vector.broadcast %cst_68 : f32 to vector<8x64xf32>
    %153 = arith.select %150, %151, %152 : vector<8x64xi1>, vector<8x64xf32>
    %154 = vector.extract_strided_slice %120 {offsets = [0, 1], sizes = [8, 1], strides = [1, 1]} : vector<8x4xi32> to vector<8x1xi32>
    %155 = vector.broadcast %154 : vector<8x1xi32> to vector<8x64xi32>
    %156 = arith.cmpi eq, %155, %0 : vector<8x64xi32>
    %cst_69 = arith.constant 1.000000e+00 : f32
    %cst_70 = arith.constant 0.000000e+00 : f32
    %157 = vector.broadcast %cst_69 : f32 to vector<8x64xf32>
    %158 = vector.broadcast %cst_70 : f32 to vector<8x64xf32>
    %159 = arith.select %156, %157, %158 : vector<8x64xi1>, vector<8x64xf32>
    %160 = arith.addf %153, %159 : vector<8x64xf32>
    %161 = vector.extract_strided_slice %120 {offsets = [0, 2], sizes = [8, 1], strides = [1, 1]} : vector<8x4xi32> to vector<8x1xi32>
    %162 = vector.broadcast %161 : vector<8x1xi32> to vector<8x64xi32>
    %163 = arith.cmpi eq, %162, %0 : vector<8x64xi32>
    %cst_71 = arith.constant 1.000000e+00 : f32
    %cst_72 = arith.constant 0.000000e+00 : f32
    %164 = vector.broadcast %cst_71 : f32 to vector<8x64xf32>
    %165 = vector.broadcast %cst_72 : f32 to vector<8x64xf32>
    %166 = arith.select %163, %164, %165 : vector<8x64xi1>, vector<8x64xf32>
    %167 = arith.addf %160, %166 : vector<8x64xf32>
    %168 = vector.extract_strided_slice %120 {offsets = [0, 3], sizes = [8, 1], strides = [1, 1]} : vector<8x4xi32> to vector<8x1xi32>
    %169 = vector.broadcast %168 : vector<8x1xi32> to vector<8x64xi32>
    %170 = arith.cmpi eq, %169, %0 : vector<8x64xi32>
    %cst_73 = arith.constant 1.000000e+00 : f32
    %cst_74 = arith.constant 0.000000e+00 : f32
    %171 = vector.broadcast %cst_73 : f32 to vector<8x64xf32>
    %172 = vector.broadcast %cst_74 : f32 to vector<8x64xf32>
    %173 = arith.select %170, %171, %172 : vector<8x64xi1>, vector<8x64xf32>
    %174 = arith.addf %167, %173 : vector<8x64xf32>
    %cst_75 = arith.constant dense<0.000000e+00> : vector<8x32xf32>
    %175 = tpu.matmul %147, %108, %cst_75 {dimension_numbers = #tpu.dot_dimension_numbers<[1], [0], [0], [1], [0, 0, 1, 1], [], []>} : vector<8x64xf32>, vector<64x32xf32>, vector<8x32xf32> -> vector<8x32xf32>
    %cst_76 = arith.constant dense<0.000000e+00> : vector<8x32xf32>
    %176 = tpu.matmul %174, %108, %cst_76 {dimension_numbers = #tpu.dot_dimension_numbers<[1], [0], [0], [1], [0, 0, 1, 1], [], []>} : vector<8x64xf32>, vector<64x32xf32>, vector<8x32xf32> -> vector<8x32xf32>
    %177 = arith.mulf %116, %175 : vector<8x32xf32>
    %cst_77 = arith.constant 1.000000e-15 : f32
    %178 = vector.broadcast %cst_77 : f32 to vector<8x32xf32>
    %179 = arith.addf %177, %178 : vector<8x32xf32>
    %180 = arith.mulf %116, %176 : vector<8x32xf32>
    %cst_78 = arith.constant 1.000000e-15 : f32
    %181 = vector.broadcast %cst_78 : f32 to vector<8x32xf32>
    %182 = arith.addf %180, %181 : vector<8x32xf32>
    %cst_79 = arith.constant 0.000000e+00 : f32
    %183 = vector.broadcast %cst_79 : f32 to vector<8x32xf32>
    %184 = arith.minimumf %179, %183 : vector<8x32xf32>
    %185 = math.absf %179 : vector<8x32xf32>
    %cst_80 = arith.constant 0.000000e+00 : f32
    %186 = vector.broadcast %cst_80 : f32 to vector<8x32xf32>
    %187 = arith.subf %186, %185 : vector<8x32xf32>
    %188 = math.exp %187 : vector<8x32xf32>
    %cst_81 = arith.constant 1.000000e+00 : f32
    %189 = vector.broadcast %cst_81 : f32 to vector<8x32xf32>
    %190 = arith.addf %189, %188 : vector<8x32xf32>
    %191 = math.log %190 : vector<8x32xf32>
    %192 = arith.subf %184, %191 : vector<8x32xf32>
    %cst_82 = arith.constant 0.000000e+00 : f32
    %193 = vector.broadcast %cst_82 : f32 to vector<8x32xf32>
    %194 = arith.subf %193, %192 : vector<8x32xf32>
    %cst_83 = arith.constant 1.000000e+00 : f32
    %195 = vector.broadcast %cst_83 : f32 to vector<8x32xf32>
    %196 = arith.subf %195, %182 : vector<8x32xf32>
    %cst_84 = arith.constant 0.000000e+00 : f32
    %197 = vector.broadcast %cst_84 : f32 to vector<8x32xf32>
    %198 = arith.minimumf %196, %197 : vector<8x32xf32>
    %199 = math.absf %196 : vector<8x32xf32>
    %cst_85 = arith.constant 0.000000e+00 : f32
    %200 = vector.broadcast %cst_85 : f32 to vector<8x32xf32>
    %201 = arith.subf %200, %199 : vector<8x32xf32>
    %202 = math.exp %201 : vector<8x32xf32>
    %cst_86 = arith.constant 1.000000e+00 : f32
    %203 = vector.broadcast %cst_86 : f32 to vector<8x32xf32>
    %204 = arith.addf %203, %202 : vector<8x32xf32>
    %205 = math.log %204 : vector<8x32xf32>
    %206 = arith.subf %198, %205 : vector<8x32xf32>
    %207 = arith.subf %194, %206 : vector<8x32xf32>
    %208 = vector.shape_cast %207 : vector<8x32xf32> to vector<1x8x32xf32>
    %cst_87 = arith.constant dense<0.000000e+00> : vector<1xf32>
    %209 = vector.multi_reduction <add>, %208, %cst_87 [1, 2] : vector<1x8x32xf32> to vector<1xf32>
    %210 = vector.shape_cast %209 : vector<1xf32> to vector<1x1x1xf32>
    %211 = vector.extract %210[0, 0, 0] : f32 from vector<1x1x1xf32>
    %212 = arith.addf %106, %211 : f32
    %c0_88 = arith.constant 0 : index
    %c0_89 = arith.constant 0 : index
    %213 = vector.load %arg6[%c0_88, %c0_89] : memref<64x32xf32, #tpu.memory_space<vmem>>, vector<64x32xf32>
    %c0_90 = arith.constant 0 : index
    %c0_91 = arith.constant 0 : index
    %214 = vector.load %arg9[%c0_90, %c0_91] : memref<64x32xf32, #tpu.memory_space<vmem>>, vector<64x32xf32>
    %c2 = arith.constant 2 : index
    %c0_92 = arith.constant 0 : index
    %c0_93 = arith.constant 0 : index
    %215 = vector.load %arg1[%c2, %c0_92, %c0_93] : memref<3x8x1xi32, #tpu.memory_space<vmem>>, vector<1x8x1xi32>
    %216 = vector.shape_cast %215 : vector<1x8x1xi32> to vector<8x1xi32>
    %217 = vector.broadcast %216 : vector<8x1xi32> to vector<8x64xi32>
    %218 = arith.cmpi eq, %217, %0 : vector<8x64xi32>
    %cst_94 = arith.constant 1.000000e+00 : f32
    %cst_95 = arith.constant 0.000000e+00 : f32
    %219 = vector.broadcast %cst_94 : f32 to vector<8x64xf32>
    %220 = vector.broadcast %cst_95 : f32 to vector<8x64xf32>
    %221 = arith.select %218, %219, %220 : vector<8x64xi1>, vector<8x64xf32>
    %cst_96 = arith.constant dense<0.000000e+00> : vector<8x32xf32>
    %222 = tpu.matmul %221, %213, %cst_96 {dimension_numbers = #tpu.dot_dimension_numbers<[1], [0], [0], [1], [0, 0, 1, 1], [], []>} : vector<8x64xf32>, vector<64x32xf32>, vector<8x32xf32> -> vector<8x32xf32>
    %c2_97 = arith.constant 2 : index
    %c0_98 = arith.constant 0 : index
    %c0_99 = arith.constant 0 : index
    %223 = vector.load %arg2[%c2_97, %c0_98, %c0_99] : memref<3x8x4xi32, #tpu.memory_space<vmem>>, vector<1x8x4xi32>
    %224 = vector.shape_cast %223 : vector<1x8x4xi32> to vector<8x4xi32>
    %c2_100 = arith.constant 2 : index
    %c0_101 = arith.constant 0 : index
    %c0_102 = arith.constant 0 : index
    %225 = vector.load %arg3[%c2_100, %c0_101, %c0_102] : memref<3x8x4xi32, #tpu.memory_space<vmem>>, vector<1x8x4xi32>
    %226 = vector.shape_cast %225 : vector<1x8x4xi32> to vector<8x4xi32>
    %227 = vector.extract_strided_slice %224 {offsets = [0, 0], sizes = [8, 1], strides = [1, 1]} : vector<8x4xi32> to vector<8x1xi32>
    %228 = vector.broadcast %227 : vector<8x1xi32> to vector<8x64xi32>
    %229 = arith.cmpi eq, %228, %0 : vector<8x64xi32>
    %cst_103 = arith.constant 1.000000e+00 : f32
    %cst_104 = arith.constant 0.000000e+00 : f32
    %230 = vector.broadcast %cst_103 : f32 to vector<8x64xf32>
    %231 = vector.broadcast %cst_104 : f32 to vector<8x64xf32>
    %232 = arith.select %229, %230, %231 : vector<8x64xi1>, vector<8x64xf32>
    %233 = vector.extract_strided_slice %224 {offsets = [0, 1], sizes = [8, 1], strides = [1, 1]} : vector<8x4xi32> to vector<8x1xi32>
    %234 = vector.broadcast %233 : vector<8x1xi32> to vector<8x64xi32>
    %235 = arith.cmpi eq, %234, %0 : vector<8x64xi32>
    %cst_105 = arith.constant 1.000000e+00 : f32
    %cst_106 = arith.constant 0.000000e+00 : f32
    %236 = vector.broadcast %cst_105 : f32 to vector<8x64xf32>
    %237 = vector.broadcast %cst_106 : f32 to vector<8x64xf32>
    %238 = arith.select %235, %236, %237 : vector<8x64xi1>, vector<8x64xf32>
    %239 = arith.addf %232, %238 : vector<8x64xf32>
    %240 = vector.extract_strided_slice %224 {offsets = [0, 2], sizes = [8, 1], strides = [1, 1]} : vector<8x4xi32> to vector<8x1xi32>
    %241 = vector.broadcast %240 : vector<8x1xi32> to vector<8x64xi32>
    %242 = arith.cmpi eq, %241, %0 : vector<8x64xi32>
    %cst_107 = arith.constant 1.000000e+00 : f32
    %cst_108 = arith.constant 0.000000e+00 : f32
    %243 = vector.broadcast %cst_107 : f32 to vector<8x64xf32>
    %244 = vector.broadcast %cst_108 : f32 to vector<8x64xf32>
    %245 = arith.select %242, %243, %244 : vector<8x64xi1>, vector<8x64xf32>
    %246 = arith.addf %239, %245 : vector<8x64xf32>
    %247 = vector.extract_strided_slice %224 {offsets = [0, 3], sizes = [8, 1], strides = [1, 1]} : vector<8x4xi32> to vector<8x1xi32>
    %248 = vector.broadcast %247 : vector<8x1xi32> to vector<8x64xi32>
    %249 = arith.cmpi eq, %248, %0 : vector<8x64xi32>
    %cst_109 = arith.constant 1.000000e+00 : f32
    %cst_110 = arith.constant 0.000000e+00 : f32
    %250 = vector.broadcast %cst_109 : f32 to vector<8x64xf32>
    %251 = vector.broadcast %cst_110 : f32 to vector<8x64xf32>
    %252 = arith.select %249, %250, %251 : vector<8x64xi1>, vector<8x64xf32>
    %253 = arith.addf %246, %252 : vector<8x64xf32>
    %254 = vector.extract_strided_slice %226 {offsets = [0, 0], sizes = [8, 1], strides = [1, 1]} : vector<8x4xi32> to vector<8x1xi32>
    %255 = vector.broadcast %254 : vector<8x1xi32> to vector<8x64xi32>
    %256 = arith.cmpi eq, %255, %0 : vector<8x64xi32>
    %cst_111 = arith.constant 1.000000e+00 : f32
    %cst_112 = arith.constant 0.000000e+00 : f32
    %257 = vector.broadcast %cst_111 : f32 to vector<8x64xf32>
    %258 = vector.broadcast %cst_112 : f32 to vector<8x64xf32>
    %259 = arith.select %256, %257, %258 : vector<8x64xi1>, vector<8x64xf32>
    %260 = vector.extract_strided_slice %226 {offsets = [0, 1], sizes = [8, 1], strides = [1, 1]} : vector<8x4xi32> to vector<8x1xi32>
    %261 = vector.broadcast %260 : vector<8x1xi32> to vector<8x64xi32>
    %262 = arith.cmpi eq, %261, %0 : vector<8x64xi32>
    %cst_113 = arith.constant 1.000000e+00 : f32
    %cst_114 = arith.constant 0.000000e+00 : f32
    %263 = vector.broadcast %cst_113 : f32 to vector<8x64xf32>
    %264 = vector.broadcast %cst_114 : f32 to vector<8x64xf32>
    %265 = arith.select %262, %263, %264 : vector<8x64xi1>, vector<8x64xf32>
    %266 = arith.addf %259, %265 : vector<8x64xf32>
    %267 = vector.extract_strided_slice %226 {offsets = [0, 2], sizes = [8, 1], strides = [1, 1]} : vector<8x4xi32> to vector<8x1xi32>
    %268 = vector.broadcast %267 : vector<8x1xi32> to vector<8x64xi32>
    %269 = arith.cmpi eq, %268, %0 : vector<8x64xi32>
    %cst_115 = arith.constant 1.000000e+00 : f32
    %cst_116 = arith.constant 0.000000e+00 : f32
    %270 = vector.broadcast %cst_115 : f32 to vector<8x64xf32>
    %271 = vector.broadcast %cst_116 : f32 to vector<8x64xf32>
    %272 = arith.select %269, %270, %271 : vector<8x64xi1>, vector<8x64xf32>
    %273 = arith.addf %266, %272 : vector<8x64xf32>
    %274 = vector.extract_strided_slice %226 {offsets = [0, 3], sizes = [8, 1], strides = [1, 1]} : vector<8x4xi32> to vector<8x1xi32>
    %275 = vector.broadcast %274 : vector<8x1xi32> to vector<8x64xi32>
    %276 = arith.cmpi eq, %275, %0 : vector<8x64xi32>
    %cst_117 = arith.constant 1.000000e+00 : f32
    %cst_118 = arith.constant 0.000000e+00 : f32
    %277 = vector.broadcast %cst_117 : f32 to vector<8x64xf32>
    %278 = vector.broadcast %cst_118 : f32 to vector<8x64xf32>
    %279 = arith.select %276, %277, %278 : vector<8x64xi1>, vector<8x64xf32>
    %280 = arith.addf %273, %279 : vector<8x64xf32>
    %cst_119 = arith.constant dense<0.000000e+00> : vector<8x32xf32>
    %281 = tpu.matmul %253, %214, %cst_119 {dimension_numbers = #tpu.dot_dimension_numbers<[1], [0], [0], [1], [0, 0, 1, 1], [], []>} : vector<8x64xf32>, vector<64x32xf32>, vector<8x32xf32> -> vector<8x32xf32>
    %cst_120 = arith.constant dense<0.000000e+00> : vector<8x32xf32>
    %282 = tpu.matmul %280, %214, %cst_120 {dimension_numbers = #tpu.dot_dimension_numbers<[1], [0], [0], [1], [0, 0, 1, 1], [], []>} : vector<8x64xf32>, vector<64x32xf32>, vector<8x32xf32> -> vector<8x32xf32>
    %283 = arith.mulf %222, %281 : vector<8x32xf32>
    %cst_121 = arith.constant 1.000000e-15 : f32
    %284 = vector.broadcast %cst_121 : f32 to vector<8x32xf32>
    %285 = arith.addf %283, %284 : vector<8x32xf32>
    %286 = arith.mulf %222, %282 : vector<8x32xf32>
    %cst_122 = arith.constant 1.000000e-15 : f32
    %287 = vector.broadcast %cst_122 : f32 to vector<8x32xf32>
    %288 = arith.addf %286, %287 : vector<8x32xf32>
    %cst_123 = arith.constant 0.000000e+00 : f32
    %289 = vector.broadcast %cst_123 : f32 to vector<8x32xf32>
    %290 = arith.minimumf %285, %289 : vector<8x32xf32>
    %291 = math.absf %285 : vector<8x32xf32>
    %cst_124 = arith.constant 0.000000e+00 : f32
    %292 = vector.broadcast %cst_124 : f32 to vector<8x32xf32>
    %293 = arith.subf %292, %291 : vector<8x32xf32>
    %294 = math.exp %293 : vector<8x32xf32>
    %cst_125 = arith.constant 1.000000e+00 : f32
    %295 = vector.broadcast %cst_125 : f32 to vector<8x32xf32>
    %296 = arith.addf %295, %294 : vector<8x32xf32>
    %297 = math.log %296 : vector<8x32xf32>
    %298 = arith.subf %290, %297 : vector<8x32xf32>
    %cst_126 = arith.constant 0.000000e+00 : f32
    %299 = vector.broadcast %cst_126 : f32 to vector<8x32xf32>
    %300 = arith.subf %299, %298 : vector<8x32xf32>
    %cst_127 = arith.constant 1.000000e+00 : f32
    %301 = vector.broadcast %cst_127 : f32 to vector<8x32xf32>
    %302 = arith.subf %301, %288 : vector<8x32xf32>
    %cst_128 = arith.constant 0.000000e+00 : f32
    %303 = vector.broadcast %cst_128 : f32 to vector<8x32xf32>
    %304 = arith.minimumf %302, %303 : vector<8x32xf32>
    %305 = math.absf %302 : vector<8x32xf32>
    %cst_129 = arith.constant 0.000000e+00 : f32
    %306 = vector.broadcast %cst_129 : f32 to vector<8x32xf32>
    %307 = arith.subf %306, %305 : vector<8x32xf32>
    %308 = math.exp %307 : vector<8x32xf32>
    %cst_130 = arith.constant 1.000000e+00 : f32
    %309 = vector.broadcast %cst_130 : f32 to vector<8x32xf32>
    %310 = arith.addf %309, %308 : vector<8x32xf32>
    %311 = math.log %310 : vector<8x32xf32>
    %312 = arith.subf %304, %311 : vector<8x32xf32>
    %313 = arith.subf %300, %312 : vector<8x32xf32>
    %314 = vector.shape_cast %313 : vector<8x32xf32> to vector<1x8x32xf32>
    %cst_131 = arith.constant dense<0.000000e+00> : vector<1xf32>
    %315 = vector.multi_reduction <add>, %314, %cst_131 [1, 2] : vector<1x8x32xf32> to vector<1xf32>
    %316 = vector.shape_cast %315 : vector<1xf32> to vector<1x1x1xf32>
    %317 = vector.extract %316[0, 0, 0] : f32 from vector<1x1x1xf32>
    %318 = arith.addf %212, %317 : f32
    %319 = vector.broadcast %318 : f32 to vector<1x1x128xf32>
    %c0_132 = arith.constant 0 : index
    %c0_133 = arith.constant 0 : index
    %c0_134 = arith.constant 0 : index
    %320 = vector.load %arg10[%c0_132, %c0_133, %c0_134] : memref<1x1x128xf32, #tpu.memory_space<vmem>>, vector<1x1x128xf32>
    tpu.vector_store %arg10[%c0_132, %c0_133, %c0_134], %319 {strides = array<i32>} : memref<1x1x128xf32, #tpu.memory_space<vmem>>, vector<1x1x128xf32>,
    return
  }
  func.func @transform_0(%arg0: i32) -> (i32, i32, i32) {
    %c0_i32 = arith.constant 0 : i32
    %c0_i32_0 = arith.constant 0 : i32
    %c0_i32_1 = arith.constant 0 : i32
    return %c0_i32, %arg0, %c0_i32_0 : i32, i32, i32
  }
  func.func @transform_1(%arg0: i32) -> (i32, i32, i32) {
    %c0_i32 = arith.constant 0 : i32
    %c0_i32_0 = arith.constant 0 : i32
    %c0_i32_1 = arith.constant 0 : i32
    return %c0_i32, %arg0, %c0_i32_0 : i32, i32, i32
  }
  func.func @transform_2(%arg0: i32) -> (i32, i32, i32) {
    %c0_i32 = arith.constant 0 : i32
    %c0_i32_0 = arith.constant 0 : i32
    %c0_i32_1 = arith.constant 0 : i32
    return %c0_i32, %arg0, %c0_i32_0 : i32, i32, i32
  }
  func.func @transform_3(%arg0: i32) -> (i32, i32) {
    %c0_i32 = arith.constant 0 : i32
    %c0_i32_0 = arith.constant 0 : i32
    %c0_i32_1 = arith.constant 0 : i32
    return %c0_i32, %c0_i32_0 : i32, i32
  }
  func.func @transform_4(%arg0: i32) -> (i32, i32) {
    %c0_i32 = arith.constant 0 : i32
    %c0_i32_0 = arith.constant 0 : i32
    %c0_i32_1 = arith.constant 0 : i32
    return %c0_i32, %c0_i32_0 : i32, i32
  }
  func.func @transform_5(%arg0: i32) -> (i32, i32) {
    %c0_i32 = arith.constant 0 : i32
    %c0_i32_0 = arith.constant 0 : i32
    %c0_i32_1 = arith.constant 0 : i32
    return %c0_i32, %c0_i32_0 : i32, i32
  }
  func.func @transform_6(%arg0: i32) -> (i32, i32) {
    %c0_i32 = arith.constant 0 : i32
    %c0_i32_0 = arith.constant 0 : i32
    %c0_i32_1 = arith.constant 0 : i32
    return %c0_i32, %c0_i32_0 : i32, i32
  }
  func.func @transform_7(%arg0: i32) -> (i32, i32) {
    %c0_i32 = arith.constant 0 : i32
    %c0_i32_0 = arith.constant 0 : i32
    %c0_i32_1 = arith.constant 0 : i32
    return %c0_i32, %c0_i32_0 : i32, i32
  }
  func.func @transform_8(%arg0: i32) -> (i32, i32) {
    %c0_i32 = arith.constant 0 : i32
    %c0_i32_0 = arith.constant 0 : i32
    %c0_i32_1 = arith.constant 0 : i32
    return %c0_i32, %c0_i32_0 : i32, i32
  }
  func.func @transform_9(%arg0: i32) -> (i32, i32, i32) {
    %c0_i32 = arith.constant 0 : i32
    %c0_i32_0 = arith.constant 0 : i32
    %c0_i32_1 = arith.constant 0 : i32
    return %arg0, %c0_i32, %c0_i32_0 : i32, i32, i32
  }
}

</mosaic_0001>

<llo_original>
// kernel: tpu_custom_call.1
$region0: #{tpu_custom_call.1}
  #allocation0 [shape = 'u32[]', space=smem, size = 0x4, offset = 0x4, fixed_abs, tag = 'smem constant byte address 0x4 - core index']
  #allocation1 [shape = 'u32[72,128]{1,0:T(1,128)}', space=vmem, size = 0x9000, scoped, tag = 'internal scratch']
  %s0 = inlined_call_operand.vmem [shape: s32[3,8,1], index: 0, kind: input, shape index: {}]
  %s1 = inlined_call_operand.vmem [shape: s32[3,8,4], index: 1, kind: input, shape index: {}]
  %s2 = inlined_call_operand.vmem [shape: s32[3,8,4], index: 2, kind: input, shape index: {}]
  %s3 = inlined_call_operand.vmem [shape: f32[64,32], index: 3, kind: input, shape index: {}]
  %s4 = inlined_call_operand.vmem [shape: f32[64,32], index: 4, kind: input, shape index: {}]
  %s5 = inlined_call_operand.vmem [shape: f32[64,32], index: 5, kind: input, shape index: {}]
  %s6 = inlined_call_operand.vmem [shape: f32[64,32], index: 6, kind: input, shape index: {}]
  %s7 = inlined_call_operand.vmem [shape: f32[64,32], index: 7, kind: input, shape index: {}]
  %s8 = inlined_call_operand.vmem [shape: f32[64,32], index: 8, kind: input, shape index: {}]
  %s9 = inlined_call_operand.hbm [shape: f32[1,1,128], index: 9, kind: output, shape index: {}]
  %s10 = sld [smem:[#allocation0]]
  $region46: #{tpu_custom_call.1} parent=0
    _
  %s12 = ssub.s32 1, %s10
  %s13 = scalar_select 0, %s12, %s10
  $region1: #{tpu_custom_call.1} parent=0
    #allocation2 [shape = 'u8[512]{0}', space=vmem, size = 0x400, scoped, tag = 'output window, operand 0, single buffered']
    #allocation3 [shape = 's32[1]{0}', space=sflag, size = 0x4, scoped, tag = 'scoped memory for tpu_custom_call.1']
    %14 = vsyncpa [#allocation3], 0
    // Predicated region
    $region2: #{tpu_custom_call.1} parent=1 // pred_check
      _
    $region3: #{tpu_custom_call.1} parent=1 // pred_check_branch
      %16 = sbr.rel (0) target = $region5
    $region4: #{tpu_custom_call.1} parent=1 // pred_region
      _
    $region5: #{tpu_custom_call.1} parent=1 // pred_fallthru
      _
    // Predicated region
    $region6: #{tpu_custom_call.1} parent=1 // pred_check
      _
    $region7: #{tpu_custom_call.1} parent=1 // pred_check_branch
      %18 = sbr.rel (0) target = $region9
    $region8: #{tpu_custom_call.1} parent=1 // pred_region
      _
    $region9: #{tpu_custom_call.1} parent=1 // pred_fallthru
      _
    // Predicated region
    $region10: #{tpu_custom_call.1} parent=1 // pred_check
      _
    $region11: #{tpu_custom_call.1} parent=1 // pred_check_branch
      %20 = sbr.rel (0) target = $region13
    $region12: #{tpu_custom_call.1} parent=1 // pred_region
      _
    $region13: #{tpu_custom_call.1} parent=1 // pred_fallthru
      _
    // Predicated region
    $region14: #{tpu_custom_call.1} parent=1 // pred_check
      _
    $region15: #{tpu_custom_call.1} parent=1 // pred_check_branch
      %22 = sbr.rel (0) target = $region17
    $region16: #{tpu_custom_call.1} parent=1 // pred_region
      _
    $region17: #{tpu_custom_call.1} parent=1 // pred_fallthru
      _
    // Predicated region
    $region18: #{tpu_custom_call.1} parent=1 // pred_check
      _
    $region19: #{tpu_custom_call.1} parent=1 // pred_check_branch
      %24 = sbr.rel (0) target = $region21
    $region20: #{tpu_custom_call.1} parent=1 // pred_region
      _
    $region21: #{tpu_custom_call.1} parent=1 // pred_fallthru
      _
    // Predicated region
    $region22: #{tpu_custom_call.1} parent=1 // pred_check
      _
    $region23: #{tpu_custom_call.1} parent=1 // pred_check_branch
      %26 = sbr.rel (0) target = $region25
    $region24: #{tpu_custom_call.1} parent=1 // pred_region
      _
    $region25: #{tpu_custom_call.1} parent=1 // pred_fallthru
      _
    // Predicated region
    $region26: #{tpu_custom_call.1} parent=1 // pred_check
      _
    $region27: #{tpu_custom_call.1} parent=1 // pred_check_branch
      %28 = sbr.rel (0) target = $region29
    $region28: #{tpu_custom_call.1} parent=1 // pred_region
      _
    $region29: #{tpu_custom_call.1} parent=1 // pred_fallthru
      _
    // Predicated region
    $region30: #{tpu_custom_call.1} parent=1 // pred_check
      _
    $region31: #{tpu_custom_call.1} parent=1 // pred_check_branch
      %30 = sbr.rel (0) target = $region33
    $region32: #{tpu_custom_call.1} parent=1 // pred_region
      _
    $region33: #{tpu_custom_call.1} parent=1 // pred_fallthru
      _
    // Predicated region
    $region34: #{tpu_custom_call.1} parent=1 // pred_check
      _
    $region35: #{tpu_custom_call.1} parent=1 // pred_check_branch
      %32 = sbr.rel (0) target = $region37
    $region36: #{tpu_custom_call.1} parent=1 // pred_region
      _
    $region37: #{tpu_custom_call.1} parent=1 // pred_fallthru
      _
    %v33 = vlaneseq
    %v34 = vand.u32 %v33, 127
    %v35 = vld [vmem:[%s3] sm:$0xff]
    %v36 = vld [vmem:[%s3 + $0x8] sm:$0xff]
    %v37 = vld [vmem:[%s3 + $0x10] sm:$0xff]
    %v38 = vld [vmem:[%s3 + $0x18] sm:$0xff]
    %v39 = vld [vmem:[%s3 + $0x20] sm:$0xff]
    %v40 = vld [vmem:[%s3 + $0x28] sm:$0xff]
    %v41 = vld [vmem:[%s3 + $0x30] sm:$0xff]
    %v42 = vld [vmem:[%s3 + $0x38] sm:$0xff]
    %v43 = vld [vmem:[%s6] sm:$0xff]
    %v44 = vld [vmem:[%s6 + $0x8] sm:$0xff]
    %v45 = vld [vmem:[%s6 + $0x10] sm:$0xff]
    %v46 = vld [vmem:[%s6 + $0x18] sm:$0xff]
    %v47 = vld [vmem:[%s6 + $0x20] sm:$0xff]
    %v48 = vld [vmem:[%s6 + $0x28] sm:$0xff]
    %v49 = vld [vmem:[%s6 + $0x30] sm:$0xff]
    %v50 = vld [vmem:[%s6 + $0x38] sm:$0xff]
    %v51 = vld [vmem:[%s0] sm:$0xff]
    %52 = vset.pattern.permute.xlu0 0
    %53 = vperm.xlu0 %52, %v51
    %v54 = vpop.permute.xlu0 %53
    %vm55 = vcmp.eq.s32.totalorder %v54, %v34
    %v56 = vsel %vm55, 1.0, 0.0
    %vm57 = vcmask 523264
    %v59 = vsel %vm57, %v56, 0
    %61 = vmatpush.msra.mxu0 0.0
    %62 = vmatpush.msra.mxu0 0.0
    %63 = vmatpush.msra.mxu0 0.0
    %64 = vmatpush.msra.mxu0 0.0
    %65 = vmatpush.msra.mxu0 0.0
    %66 = vmatpush.msra.mxu0 0.0
    %67 = vmatpush.msra.mxu0 0.0
    %68 = vmatpush.msra.mxu0 0.0
    %69 = vmatpush.msra.mxu0 %v42
    %70 = vmatpush.msra.mxu0 %v41
    %71 = vmatpush.msra.mxu0 %v40
    %72 = vmatpush.msra.mxu0 %v39
    %73 = vmatpush.msra.mxu0 %v38
    %74 = vmatpush.msra.mxu0 %v37
    %75 = vmatpush.msra.mxu0 %v36
    %76 = vmatpush.msra.mxu0 %v35
    %77 = vmatmul.f32.gmra.mxu0 %v59
    %v78 = vpop.f32.mrf.mxu0
    %v79 = vadd.f32 0.0, %v78
    %80 = vdwg.mxu0
    %v81 = vld [vmem:[%s1] sm:$0xff]
    %v82 = vld [vmem:[%s2] sm:$0xff]
    %83 = vset.pattern.permute.xlu0 0
    %84 = vperm.xlu0 %83, %v81
    %v85 = vpop.permute.xlu0 %84
    %vm86 = vcmp.eq.s32.totalorder %v85, %v34
    %v87 = vsel %vm86, 1.0, 0.0
    %88 = vset.pattern.permute.xlu0 1
    %89 = vperm.xlu0 %88, %v81
    %v90 = vpop.permute.xlu0 %89
    %vm91 = vcmp.eq.s32.totalorder %v90, %v34
    %v92 = vsel %vm91, 1.0, 0.0
    %v93 = vadd.f32 %v87, %v92
    %94 = vset.pattern.permute.xlu0 2
    %95 = vperm.xlu0 %94, %v81
    %v96 = vpop.permute.xlu0 %95
    %vm97 = vcmp.eq.s32.totalorder %v96, %v34
    %v98 = vsel %vm97, 1.0, 0.0
    %v99 = vadd.f32 %v93, %v98
    %100 = vset.pattern.permute.xlu0 3
    %101 = vperm.xlu0 %100, %v81
    %v102 = vpop.permute.xlu0 %101
    %vm103 = vcmp.eq.s32.totalorder %v102, %v34
    %v104 = vsel %vm103, 1.0, 0.0
    %v105 = vadd.f32 %v99, %v104
    %106 = vset.pattern.permute.xlu0 0
    %107 = vperm.xlu0 %106, %v82
    %v108 = vpop.permute.xlu0 %107
    %vm109 = vcmp.eq.s32.totalorder %v108, %v34
    %v110 = vsel %vm109, 1.0, 0.0
    %111 = vset.pattern.permute.xlu0 1
    %112 = vperm.xlu0 %111, %v82
    %v113 = vpop.permute.xlu0 %112
    %vm114 = vcmp.eq.s32.totalorder %v113, %v34
    %v115 = vsel %vm114, 1.0, 0.0
    %v116 = vadd.f32 %v110, %v115
    %117 = vset.pattern.permute.xlu0 2
    %118 = vperm.xlu0 %117, %v82
    %v119 = vpop.permute.xlu0 %118
    %vm120 = vcmp.eq.s32.totalorder %v119, %v34
    %v121 = vsel %vm120, 1.0, 0.0
    %v122 = vadd.f32 %v116, %v121
    %123 = vset.pattern.permute.xlu0 3
    %124 = vperm.xlu0 %123, %v82
    %v125 = vpop.permute.xlu0 %124
    %vm126 = vcmp.eq.s32.totalorder %v125, %v34
    %v127 = vsel %vm126, 1.0, 0.0
    %v128 = vadd.f32 %v122, %v127
    %v130 = vsel %vm57, %v105, 0
    %132 = vmatpush.msra.mxu0 0.0
    %133 = vmatpush.msra.mxu0 0.0
    %134 = vmatpush.msra.mxu0 0.0
    %135 = vmatpush.msra.mxu0 0.0
    %136 = vmatpush.msra.mxu0 0.0
    %137 = vmatpush.msra.mxu0 0.0
    %138 = vmatpush.msra.mxu0 0.0
    %139 = vmatpush.msra.mxu0 0.0
    %140 = vmatpush.msra.mxu0 %v50
    %141 = vmatpush.msra.mxu0 %v49
    %142 = vmatpush.msra.mxu0 %v48
    %143 = vmatpush.msra.mxu0 %v47
    %144 = vmatpush.msra.mxu0 %v46
    %145 = vmatpush.msra.mxu0 %v45
    %146 = vmatpush.msra.mxu0 %v44
    %147 = vmatpush.msra.mxu0 %v43
    %148 = vmatmul.f32.gmra.mxu0 %v130
    %v149 = vpop.f32.mrf.mxu0
    %v150 = vadd.f32 0.0, %v149
    %151 = vdwg.mxu0
    %v153 = vsel %vm57, %v128, 0
    %155 = vmatpush.msra.mxu0 0.0
    %156 = vmatpush.msra.mxu0 0.0
    %157 = vmatpush.msra.mxu0 0.0
    %158 = vmatpush.msra.mxu0 0.0
    %159 = vmatpush.msra.mxu0 0.0
    %160 = vmatpush.msra.mxu0 0.0
    %161 = vmatpush.msra.mxu0 0.0
    %162 = vmatpush.msra.mxu0 0.0
    %163 = vmatpush.msra.mxu0 %v50
    %164 = vmatpush.msra.mxu0 %v49
    %165 = vmatpush.msra.mxu0 %v48
    %166 = vmatpush.msra.mxu0 %v47
    %167 = vmatpush.msra.mxu0 %v46
    %168 = vmatpush.msra.mxu0 %v45
    %169 = vmatpush.msra.mxu0 %v44
    %170 = vmatpush.msra.mxu0 %v43
    %171 = vmatmul.f32.gmra.mxu0 %v153
    %v172 = vpop.f32.mrf.mxu0
    %v173 = vadd.f32 0.0, %v172
    %174 = vdwg.mxu0
    %v175 = vmul.f32 %v79, %v150
    %v176 = vadd.f32 %v175, 1e-15
    %v177 = vmul.f32 %v79, %v173
    %v178 = vadd.f32 %v177, 1e-15
    %v179 = vmin.f32 %v176, 0.0
    %v180 = vand.u32 2147483647, %v176
    %v181 = vsub.f32 0.0, %v180
    %v182 = vmul.f32 %v181, 1.442695
    %v183 = vpow.pop %v182
    %v184 = vadd.f32 %v183, 1.0
    %v185 = vlog2.pop %v184
    %v186 = vmul.f32 %v185, 0.6931472
    %v187 = vsub.f32 %v179, %v186
    %v188 = vsub.f32 0.0, %v187
    %v189 = vsub.f32 1.0, %v178
    %v190 = vmin.f32 %v189, 0.0
    %v191 = vand.u32 2147483647, %v189
    %v192 = vsub.f32 0.0, %v191
    %v193 = vmul.f32 %v192, 1.442695
    %v194 = vpow.pop %v193
    %v195 = vadd.f32 %v194, 1.0
    %v196 = vlog2.pop %v195
    %v197 = vmul.f32 %v196, 0.6931472
    %v198 = vsub.f32 %v190, %v197
    %v199 = vsub.f32 %v188, %v198
    %vm200 = vcmask 261120
    %v201 = vsel %vm200, %v199, 0.0
    %202 = vadd.xlane.f32.xlu0 %v201
    %v203 = vpop.xlane.xlu0 %202
    %v204 = vrot.slane %v203, 4
    %v205 = vadd.f32 %v203, %v204
    %v206 = vrot.slane %v205, 2
    %v207 = vadd.f32 %v205, %v206
    %v208 = vrot.slane %v207, 1
    %v209 = vadd.f32 %v207, %v208
    %s210 = vtos %v209
    %s211 = sadd.f32 %s210, 0.0
    %v212 = vld [vmem:[%s4] sm:$0xff]
    %v213 = vld [vmem:[%s4 + $0x8] sm:$0xff]
    %v214 = vld [vmem:[%s4 + $0x10] sm:$0xff]
    %v215 = vld [vmem:[%s4 + $0x18] sm:$0xff]
    %v216 = vld [vmem:[%s4 + $0x20] sm:$0xff]
    %v217 = vld [vmem:[%s4 + $0x28] sm:$0xff]
    %v218 = vld [vmem:[%s4 + $0x30] sm:$0xff]
    %v219 = vld [vmem:[%s4 + $0x38] sm:$0xff]
    %v220 = vld [vmem:[%s7] sm:$0xff]
    %v221 = vld [vmem:[%s7 + $0x8] sm:$0xff]
    %v222 = vld [vmem:[%s7 + $0x10] sm:$0xff]
    %v223 = vld [vmem:[%s7 + $0x18] sm:$0xff]
    %v224 = vld [vmem:[%s7 + $0x20] sm:$0xff]
    %v225 = vld [vmem:[%s7 + $0x28] sm:$0xff]
    %v226 = vld [vmem:[%s7 + $0x30] sm:$0xff]
    %v227 = vld [vmem:[%s7 + $0x38] sm:$0xff]
    %s228 = scalar_lea.vmem %s0, 8
    %v229 = vld [vmem:[%s228] sm:$0xff]
    %230 = vset.pattern.permute.xlu0 0
    %231 = vperm.xlu0 %230, %v229
    %v232 = vpop.permute.xlu0 %231
    %vm233 = vcmp.eq.s32.totalorder %v232, %v34
    %v234 = vsel %vm233, 1.0, 0.0
    %v236 = vsel %vm57, %v234, 0
    %238 = vmatpush.msra.mxu0 0.0
    %239 = vmatpush.msra.mxu0 0.0
    %240 = vmatpush.msra.mxu0 0.0
    %241 = vmatpush.msra.mxu0 0.0
    %242 = vmatpush.msra.mxu0 0.0
    %243 = vmatpush.msra.mxu0 0.0
    %244 = vmatpush.msra.mxu0 0.0
    %245 = vmatpush.msra.mxu0 0.0
    %246 = vmatpush.msra.mxu0 %v219
    %247 = vmatpush.msra.mxu0 %v218
    %248 = vmatpush.msra.mxu0 %v217
    %249 = vmatpush.msra.mxu0 %v216
    %250 = vmatpush.msra.mxu0 %v215
    %251 = vmatpush.msra.mxu0 %v214
    %252 = vmatpush.msra.mxu0 %v213
    %253 = vmatpush.msra.mxu0 %v212
    %254 = vmatmul.f32.gmra.mxu0 %v236
    %v255 = vpop.f32.mrf.mxu0
    %v256 = vadd.f32 0.0, %v255
    %257 = vdwg.mxu0
    %s258 = scalar_lea.vmem %s1, 8
    %v259 = vld [vmem:[%s258] sm:$0xff]
    %s260 = scalar_lea.vmem %s2, 8
    %v261 = vld [vmem:[%s260] sm:$0xff]
    %262 = vset.pattern.permute.xlu0 0
    %263 = vperm.xlu0 %262, %v259
    %v264 = vpop.permute.xlu0 %263
    %vm265 = vcmp.eq.s32.totalorder %v264, %v34
    %v266 = vsel %vm265, 1.0, 0.0
    %267 = vset.pattern.permute.xlu0 1
    %268 = vperm.xlu0 %267, %v259
    %v269 = vpop.permute.xlu0 %268
    %vm270 = vcmp.eq.s32.totalorder %v269, %v34
    %v271 = vsel %vm270, 1.0, 0.0
    %v272 = vadd.f32 %v266, %v271
    %273 = vset.pattern.permute.xlu0 2
    %274 = vperm.xlu0 %273, %v259
    %v275 = vpop.permute.xlu0 %274
    %vm276 = vcmp.eq.s32.totalorder %v275, %v34
    %v277 = vsel %vm276, 1.0, 0.0
    %v278 = vadd.f32 %v272, %v277
    %279 = vset.pattern.permute.xlu0 3
    %280 = vperm.xlu0 %279, %v259
    %v281 = vpop.permute.xlu0 %280
    %vm282 = vcmp.eq.s32.totalorder %v281, %v34
    %v283 = vsel %vm282, 1.0, 0.0
    %v284 = vadd.f32 %v278, %v283
    %285 = vset.pattern.permute.xlu0 0
    %286 = vperm.xlu0 %285, %v261
    %v287 = vpop.permute.xlu0 %286
    %vm288 = vcmp.eq.s32.totalorder %v287, %v34
    %v289 = vsel %vm288, 1.0, 0.0
    %290 = vset.pattern.permute.xlu0 1
    %291 = vperm.xlu0 %290, %v261
    %v292 = vpop.permute.xlu0 %291
    %vm293 = vcmp.eq.s32.totalorder %v292, %v34
    %v294 = vsel %vm293, 1.0, 0.0
    %v295 = vadd.f32 %v289, %v294
    %296 = vset.pattern.permute.xlu0 2
    %297 = vperm.xlu0 %296, %v261
    %v298 = vpop.permute.xlu0 %297
    %vm299 = vcmp.eq.s32.totalorder %v298, %v34
    %v300 = vsel %vm299, 1.0, 0.0
    %v301 = vadd.f32 %v295, %v300
    %302 = vset.pattern.permute.xlu0 3
    %303 = vperm.xlu0 %302, %v261
    %v304 = vpop.permute.xlu0 %303
    %vm305 = vcmp.eq.s32.totalorder %v304, %v34
    %v306 = vsel %vm305, 1.0, 0.0
    %v307 = vadd.f32 %v301, %v306
    %v309 = vsel %vm57, %v284, 0
    %311 = vmatpush.msra.mxu0 0.0
    %312 = vmatpush.msra.mxu0 0.0
    %313 = vmatpush.msra.mxu0 0.0
    %314 = vmatpush.msra.mxu0 0.0
    %315 = vmatpush.msra.mxu0 0.0
    %316 = vmatpush.msra.mxu0 0.0
    %317 = vmatpush.msra.mxu0 0.0
    %318 = vmatpush.msra.mxu0 0.0
    %319 = vmatpush.msra.mxu0 %v227
    %320 = vmatpush.msra.mxu0 %v226
    %321 = vmatpush.msra.mxu0 %v225
    %322 = vmatpush.msra.mxu0 %v224
    %323 = vmatpush.msra.mxu0 %v223
    %324 = vmatpush.msra.mxu0 %v222
    %325 = vmatpush.msra.mxu0 %v221
    %326 = vmatpush.msra.mxu0 %v220
    %327 = vmatmul.f32.gmra.mxu0 %v309
    %v328 = vpop.f32.mrf.mxu0
    %v329 = vadd.f32 0.0, %v328
    %330 = vdwg.mxu0
    %v332 = vsel %vm57, %v307, 0
    %334 = vmatpush.msra.mxu0 0.0
    %335 = vmatpush.msra.mxu0 0.0
    %336 = vmatpush.msra.mxu0 0.0
    %337 = vmatpush.msra.mxu0 0.0
    %338 = vmatpush.msra.mxu0 0.0
    %339 = vmatpush.msra.mxu0 0.0
    %340 = vmatpush.msra.mxu0 0.0
    %341 = vmatpush.msra.mxu0 0.0
    %342 = vmatpush.msra.mxu0 %v227
    %343 = vmatpush.msra.mxu0 %v226
    %344 = vmatpush.msra.mxu0 %v225
    %345 = vmatpush.msra.mxu0 %v224
    %346 = vmatpush.msra.mxu0 %v223
    %347 = vmatpush.msra.mxu0 %v222
    %348 = vmatpush.msra.mxu0 %v221
    %349 = vmatpush.msra.mxu0 %v220
    %350 = vmatmul.f32.gmra.mxu0 %v332
    %v351 = vpop.f32.mrf.mxu0
    %v352 = vadd.f32 0.0, %v351
    %353 = vdwg.mxu0
    %v354 = vmul.f32 %v256, %v329
    %v355 = vadd.f32 %v354, 1e-15
    %v356 = vmul.f32 %v256, %v352
    %v357 = vadd.f32 %v356, 1e-15
    %v358 = vmin.f32 %v355, 0.0
    %v359 = vand.u32 2147483647, %v355
    %v360 = vsub.f32 0.0, %v359
    %v361 = vmul.f32 %v360, 1.442695
    %v362 = vpow.pop %v361
    %v363 = vadd.f32 %v362, 1.0
    %v364 = vlog2.pop %v363
    %v365 = vmul.f32 %v364, 0.6931472
    %v366 = vsub.f32 %v358, %v365
    %v367 = vsub.f32 0.0, %v366
    %v368 = vsub.f32 1.0, %v357
    %v369 = vmin.f32 %v368, 0.0
    %v370 = vand.u32 2147483647, %v368
    %v371 = vsub.f32 0.0, %v370
    %v372 = vmul.f32 %v371, 1.442695
    %v373 = vpow.pop %v372
    %v374 = vadd.f32 %v373, 1.0
    %v375 = vlog2.pop %v374
    %v376 = vmul.f32 %v375, 0.6931472
    %v377 = vsub.f32 %v369, %v376
    %v378 = vsub.f32 %v367, %v377
    %v379 = vsel %vm200, %v378, 0.0
    %380 = vadd.xlane.f32.xlu0 %v379
    %v381 = vpop.xlane.xlu0 %380
    %v382 = vrot.slane %v381, 4
    %v383 = vadd.f32 %v381, %v382
    %v384 = vrot.slane %v383, 2
    %v385 = vadd.f32 %v383, %v384
    %v386 = vrot.slane %v385, 1
    %v387 = vadd.f32 %v385, %v386
    %s388 = vtos %v387
    %s389 = sadd.f32 %s211, %s388
    %v390 = vld [vmem:[%s5] sm:$0xff]
    %v391 = vld [vmem:[%s5 + $0x8] sm:$0xff]
    %v392 = vld [vmem:[%s5 + $0x10] sm:$0xff]
    %v393 = vld [vmem:[%s5 + $0x18] sm:$0xff]
    %v394 = vld [vmem:[%s5 + $0x20] sm:$0xff]
    %v395 = vld [vmem:[%s5 + $0x28] sm:$0xff]
    %v396 = vld [vmem:[%s5 + $0x30] sm:$0xff]
    %v397 = vld [vmem:[%s5 + $0x38] sm:$0xff]
    %v398 = vld [vmem:[%s8] sm:$0xff]
    %v399 = vld [vmem:[%s8 + $0x8] sm:$0xff]
    %v400 = vld [vmem:[%s8 + $0x10] sm:$0xff]
    %v401 = vld [vmem:[%s8 + $0x18] sm:$0xff]
    %v402 = vld [vmem:[%s8 + $0x20] sm:$0xff]
    %v403 = vld [vmem:[%s8 + $0x28] sm:$0xff]
    %v404 = vld [vmem:[%s8 + $0x30] sm:$0xff]
    %v405 = vld [vmem:[%s8 + $0x38] sm:$0xff]
    %s406 = scalar_lea.vmem %s0, 16
    %v407 = vld [vmem:[%s406] sm:$0xff]
    %408 = vset.pattern.permute.xlu0 0
    %409 = vperm.xlu0 %408, %v407
    %v410 = vpop.permute.xlu0 %409
    %vm411 = vcmp.eq.s32.totalorder %v410, %v34
    %v412 = vsel %vm411, 1.0, 0.0
    %v414 = vsel %vm57, %v412, 0
    %416 = vmatpush.msra.mxu0 0.0
    %417 = vmatpush.msra.mxu0 0.0
    %418 = vmatpush.msra.mxu0 0.0
    %419 = vmatpush.msra.mxu0 0.0
    %420 = vmatpush.msra.mxu0 0.0
    %421 = vmatpush.msra.mxu0 0.0
    %422 = vmatpush.msra.mxu0 0.0
    %423 = vmatpush.msra.mxu0 0.0
    %424 = vmatpush.msra.mxu0 %v397
    %425 = vmatpush.msra.mxu0 %v396
    %426 = vmatpush.msra.mxu0 %v395
    %427 = vmatpush.msra.mxu0 %v394
    %428 = vmatpush.msra.mxu0 %v393
    %429 = vmatpush.msra.mxu0 %v392
    %430 = vmatpush.msra.mxu0 %v391
    %431 = vmatpush.msra.mxu0 %v390
    %432 = vmatmul.f32.gmra.mxu0 %v414
    %v433 = vpop.f32.mrf.mxu0
    %v434 = vadd.f32 0.0, %v433
    %435 = vdwg.mxu0
    %s436 = scalar_lea.vmem %s1, 16
    %v437 = vld [vmem:[%s436] sm:$0xff]
    %s438 = scalar_lea.vmem %s2, 16
    %v439 = vld [vmem:[%s438] sm:$0xff]
    %440 = vset.pattern.permute.xlu0 0
    %441 = vperm.xlu0 %440, %v437
    %v442 = vpop.permute.xlu0 %441
    %vm443 = vcmp.eq.s32.totalorder %v442, %v34
    %v444 = vsel %vm443, 1.0, 0.0
    %445 = vset.pattern.permute.xlu0 1
    %446 = vperm.xlu0 %445, %v437
    %v447 = vpop.permute.xlu0 %446
    %vm448 = vcmp.eq.s32.totalorder %v447, %v34
    %v449 = vsel %vm448, 1.0, 0.0
    %v450 = vadd.f32 %v444, %v449
    %451 = vset.pattern.permute.xlu0 2
    %452 = vperm.xlu0 %451, %v437
    %v453 = vpop.permute.xlu0 %452
    %vm454 = vcmp.eq.s32.totalorder %v453, %v34
    %v455 = vsel %vm454, 1.0, 0.0
    %v456 = vadd.f32 %v450, %v455
    %457 = vset.pattern.permute.xlu0 3
    %458 = vperm.xlu0 %457, %v437
    %v459 = vpop.permute.xlu0 %458
    %vm460 = vcmp.eq.s32.totalorder %v459, %v34
    %v461 = vsel %vm460, 1.0, 0.0
    %v462 = vadd.f32 %v456, %v461
    %463 = vset.pattern.permute.xlu0 0
    %464 = vperm.xlu0 %463, %v439
    %v465 = vpop.permute.xlu0 %464
    %vm466 = vcmp.eq.s32.totalorder %v465, %v34
    %v467 = vsel %vm466, 1.0, 0.0
    %468 = vset.pattern.permute.xlu0 1
    %469 = vperm.xlu0 %468, %v439
    %v470 = vpop.permute.xlu0 %469
    %vm471 = vcmp.eq.s32.totalorder %v470, %v34
    %v472 = vsel %vm471, 1.0, 0.0
    %v473 = vadd.f32 %v467, %v472
    %474 = vset.pattern.permute.xlu0 2
    %475 = vperm.xlu0 %474, %v439
    %v476 = vpop.permute.xlu0 %475
    %vm477 = vcmp.eq.s32.totalorder %v476, %v34
    %v478 = vsel %vm477, 1.0, 0.0
    %v479 = vadd.f32 %v473, %v478
    %480 = vset.pattern.permute.xlu0 3
    %481 = vperm.xlu0 %480, %v439
    %v482 = vpop.permute.xlu0 %481
    %vm483 = vcmp.eq.s32.totalorder %v482, %v34
    %v484 = vsel %vm483, 1.0, 0.0
    %v485 = vadd.f32 %v479, %v484
    %v487 = vsel %vm57, %v462, 0
    %489 = vmatpush.msra.mxu0 0.0
    %490 = vmatpush.msra.mxu0 0.0
    %491 = vmatpush.msra.mxu0 0.0
    %492 = vmatpush.msra.mxu0 0.0
    %493 = vmatpush.msra.mxu0 0.0
    %494 = vmatpush.msra.mxu0 0.0
    %495 = vmatpush.msra.mxu0 0.0
    %496 = vmatpush.msra.mxu0 0.0
    %497 = vmatpush.msra.mxu0 %v405
    %498 = vmatpush.msra.mxu0 %v404
    %499 = vmatpush.msra.mxu0 %v403
    %500 = vmatpush.msra.mxu0 %v402
    %501 = vmatpush.msra.mxu0 %v401
    %502 = vmatpush.msra.mxu0 %v400
    %503 = vmatpush.msra.mxu0 %v399
    %504 = vmatpush.msra.mxu0 %v398
    %505 = vmatmul.f32.gmra.mxu0 %v487
    %v506 = vpop.f32.mrf.mxu0
    %v507 = vadd.f32 0.0, %v506
    %508 = vdwg.mxu0
    %v510 = vsel %vm57, %v485, 0
    %512 = vmatpush.msra.mxu0 0.0
    %513 = vmatpush.msra.mxu0 0.0
    %514 = vmatpush.msra.mxu0 0.0
    %515 = vmatpush.msra.mxu0 0.0
    %516 = vmatpush.msra.mxu0 0.0
    %517 = vmatpush.msra.mxu0 0.0
    %518 = vmatpush.msra.mxu0 0.0
    %519 = vmatpush.msra.mxu0 0.0
    %520 = vmatpush.msra.mxu0 %v405
    %521 = vmatpush.msra.mxu0 %v404
    %522 = vmatpush.msra.mxu0 %v403
    %523 = vmatpush.msra.mxu0 %v402
    %524 = vmatpush.msra.mxu0 %v401
    %525 = vmatpush.msra.mxu0 %v400
    %526 = vmatpush.msra.mxu0 %v399
    %527 = vmatpush.msra.mxu0 %v398
    %528 = vmatmul.f32.gmra.mxu0 %v510
    %v529 = vpop.f32.mrf.mxu0
    %v530 = vadd.f32 0.0, %v529
    %531 = vdwg.mxu0
    %v532 = vmul.f32 %v434, %v507
    %v533 = vadd.f32 %v532, 1e-15
    %v534 = vmul.f32 %v434, %v530
    %v535 = vadd.f32 %v534, 1e-15
    %v536 = vmin.f32 %v533, 0.0
    %v537 = vand.u32 2147483647, %v533
    %v538 = vsub.f32 0.0, %v537
    %v539 = vmul.f32 %v538, 1.442695
    %v540 = vpow.pop %v539
    %v541 = vadd.f32 %v540, 1.0
    %v542 = vlog2.pop %v541
    %v543 = vmul.f32 %v542, 0.6931472
    %v544 = vsub.f32 %v536, %v543
    %v545 = vsub.f32 0.0, %v544
    %v546 = vsub.f32 1.0, %v535
    %v547 = vmin.f32 %v546, 0.0
    %v548 = vand.u32 2147483647, %v546
    %v549 = vsub.f32 0.0, %v548
    %v550 = vmul.f32 %v549, 1.442695
    %v551 = vpow.pop %v550
    %v552 = vadd.f32 %v551, 1.0
    %v553 = vlog2.pop %v552
    %v554 = vmul.f32 %v553, 0.6931472
    %v555 = vsub.f32 %v547, %v554
    %v556 = vsub.f32 %v545, %v555
    %v557 = vsel %vm200, %v556, 0.0
    %558 = vadd.xlane.f32.xlu0 %v557
    %v559 = vpop.xlane.xlu0 %558
    %v560 = vrot.slane %v559, 4
    %v561 = vadd.f32 %v559, %v560
    %v562 = vrot.slane %v561, 2
    %v563 = vadd.f32 %v561, %v562
    %v564 = vrot.slane %v563, 1
    %v565 = vadd.f32 %v563, %v564
    %s566 = vtos %v565
    %s567 = sadd.f32 %s389, %s566
    %v568 = vstv %s567
    %569 = vst [vmem:[#allocation2] sm:$0x1] %v568
    // Predicated region
    $region38: #{tpu_custom_call.1} parent=1 // pred_check
      _
    $region39: #{tpu_custom_call.1} parent=1 // pred_check_branch
      %571 = sbr.rel (0) target = $region41
    $region40: #{tpu_custom_call.1} parent=1 // pred_region
      %573 = vsyncadd [#allocation3], 0
      %s575 = sshll.u32 [#allocation2], 4
      %s576 = int_to_ptr.vmem [resolvable:$true] %s575
      %s577 = sshll.u32 %s9, 4
      %s578 = int_to_ptr.hbm [resolvable:$true] %s577
      %580 = dma.vmem_to_hbm [thread:$0]  %s576, 16, %s578, [#allocation3]
    $region41: #{tpu_custom_call.1} parent=1 // pred_fallthru
      _
    // Predicated region
    $region42: #{tpu_custom_call.1} parent=1 // pred_check
      _
    $region43: #{tpu_custom_call.1} parent=1 // pred_check_branch
      %582 = sbr.rel (0) target = $region45
    $region44: #{tpu_custom_call.1} parent=1 // pred_region
      %584 = dma.done [#allocation3], 16
    $region45: #{tpu_custom_call.1} parent=1 // pred_fallthru
      _
    %585 = vsyncpa [#allocation3], 1

</llo_original>
